<compile_context>
chip_gen: v6e
topology: v6e:2x2x1
jax: 0.10.0
libtpu: 0.0.40
codegen_flags: <defaults>
</compile_context>

<pallas_src>
import functools

import jax
import jax.numpy as jnp
from jax.experimental import pallas as pl
from jax.experimental.pallas import tpu as pltpu

LN_EPS = 1e-5


def _round_up(a, b):
    return -(-a // b) * b


def _default_row_tile():
    """Per-generation packed-row tile: bigger on v7x (faster HBM, 2 TCs)."""
    try:
        kind = jax.devices()[0].device_kind.lower()
    except Exception:
        return 1024
    return 2048 if "v7" in kind else 1024


def _linear_resblock_kernel(x_ref, wcat_ref, seg_ref, p_ref, o_ref):
    """o = x + relu(layernorm(x @ W^T + b)) on one lane-packed row tile.

    x_ref    : (TM, L)  input rows, native dtype (L = pack*C lanes)
    wcat_ref : (L, 2L)  [W_block | W_block @ seg], MXU dtype
    seg_ref  : (L, L)   block segment-mean matrix (1/C blocks), MXU dtype
    p_ref    : (3, L)   rows = (bias - segmean(bias)), gamma, beta  (f32)
    """
    lanes = seg_ref.shape[0]
    x = x_ref[...]

    # One 256-wide MXU pass: z = x @ W_block and m = segmean(z) together.
    zm = jnp.dot(x.astype(wcat_ref.dtype), wcat_ref[...],
                 preferred_element_type=jnp.float32)          # (TM, 2L) f32
    z = zm[:, :lanes]
    m = zm[:, lanes:]

    p = p_ref[...]                                            # (3, L) f32
    # centered = (x@W + b) - segmean(x@W + b) = (z - m) + (b - segmean(b))
    centered = (z - m) + p[0:1, :]

    # Biased variance per C-segment via one more lane-dense MXU pass.
    sq = (centered * centered).astype(seg_ref.dtype)
    var = jnp.dot(sq, seg_ref[...], preferred_element_type=jnp.float32)

    inv_std = jax.lax.rsqrt(var + LN_EPS)                     # EUP (keep rsqrt)
    y_norm = centered * inv_std * p[1:2, :] + p[2:3, :]
    res = jnp.maximum(y_norm, 0.0)                            # ReLU

    xf = x if x.dtype == jnp.float32 else x.astype(jnp.float32)
    o_ref[...] = (xf + res).astype(o_ref.dtype)


@functools.partial(jax.jit, static_argnames=("row_tile", "mxu_dtype"))
def _linear_resblock_impl(x, w_t, b, gamma, beta, *, row_tile, mxu_dtype):
    n, c = x.shape
    dtype = x.dtype
    md = jnp.dtype(mxu_dtype)
    f32 = jnp.float32

    # Lane packing factor: put `pack` samples into one 128-lane slab.
    pack = (128 // c) if (c < 128 and 128 % c == 0) else 1
    lanes = pack * c

    # Pad only up to the next multiple of 8*pack rows (keeps every block a clean
    # multiple of 8 sublanes); no pad at all when N is already aligned.
    n_pad = _round_up(n, 8 * pack)
    if n_pad != n:
        x = jnp.pad(x, ((0, n_pad - n), (0, 0)))
    packed_n = n_pad // pack                      # multiple of 8
    x_packed = x.reshape(packed_n, lanes)         # pure reinterpretation

    # Row tile: as large as possible (amortise ~0.35us/step) but aim for >= 2
    # grid steps so v7x's two TensorCores both get work.  The last block may be
    # partial for large unaligned N (Pallas masks boundary blocks).
    tile = min(row_tile, max(8, _round_up(pl.cdiv(packed_n, 2), 8)))
    tile = min(tile, packed_n)
    num_tiles = pl.cdiv(packed_n, tile)

    # Block-diagonal weight fused with the segment-mean reduction.
    w_block = jnp.kron(jnp.eye(pack, dtype=f32), w_t.astype(f32))        # (L, L)
    seg_f32 = jnp.kron(jnp.eye(pack, dtype=f32),
                       jnp.full((c, c), 1.0 / c, dtype=f32))             # (L, L)
    w_cat = jnp.concatenate([w_block, w_block @ seg_f32], axis=1).astype(md)
    seg = seg_f32.astype(md)

    b32 = b.astype(f32)
    params = jnp.stack([jnp.tile(b32 - jnp.mean(b32), pack),   # b - segmean(b)
                        jnp.tile(gamma.astype(f32), pack),
                        jnp.tile(beta.astype(f32), pack)])     # (3, L) f32

    itemsize = jnp.dtype(dtype).itemsize
    # Explicit scoped-VMEM budget: double-buffered x/out blocks + residents +
    # f32 temporaries.  Prevents v5e's 16 MiB default from biting at big tiles;
    # stays well under v7x's 64 MiB physical VMEM.
    est = (2 * 2 * tile * lanes * itemsize          # x + out, double buffered
           + 2 * 3 * lanes * lanes * md.itemsize    # W_cat + seg
           + 2 * 3 * lanes * 4                      # params
           + 6 * tile * lanes * 4)                  # f32 temporaries headroom
    vmem_limit = int(min(64 << 20, max(32 << 20, 2 * est)))

    cost = pl.CostEstimate(
        flops=2 * packed_n * lanes * (2 * lanes) + 2 * packed_n * lanes * lanes,
        transcendentals=packed_n * lanes,
        bytes_accessed=(2 * packed_n * lanes * itemsize
                        + 3 * lanes * lanes * md.itemsize + 3 * lanes * 4),
    )

    out_packed = pl.pallas_call(
        _linear_resblock_kernel,
        out_shape=jax.ShapeDtypeStruct((packed_n, lanes), dtype),
        grid_spec=pltpu.PrefetchScalarGridSpec(
            num_scalar_prefetch=0,
            grid=(num_tiles,),
            in_specs=[
                pl.BlockSpec((tile, lanes), lambda i: (i, 0)),       # x rows
                pl.BlockSpec((lanes, 2 * lanes), lambda i: (0, 0)),  # W_cat
                pl.BlockSpec((lanes, lanes), lambda i: (0, 0)),      # seg
                pl.BlockSpec((3, lanes), lambda i: (0, 0)),          # params
            ],
            out_specs=pl.BlockSpec((tile, lanes), lambda i: (i, 0)),
        ),
        compiler_params=pltpu.CompilerParams(
            dimension_semantics=("parallel",),
            vmem_limit_bytes=vmem_limit,
        ),
        cost_estimate=cost,
    )(x_packed, w_cat, seg, params)

    out = out_packed.reshape(n_pad, c)
    if n_pad != n:
        out = out[:n]
    return out


def linear_resblock(x, w_t, b, gamma, beta, *, row_tile=None,
                    mxu_dtype=jnp.bfloat16):
    """x: (N, C); w_t = linear.weight.T: (C, C); b / gamma / beta: (C,).

    mxu_dtype=jnp.bfloat16 (default): bf16 MXU operands, f32 accumulation
    (MXU-native, keeps the kernel HBM-bound on every TPU generation).
    mxu_dtype=jnp.float32: reference-accurate numerics (slower MXU path).
    """
    if row_tile is None:
        row_tile = _default_row_tile()
    return _linear_resblock_impl(x, w_t, b, gamma, beta,
                                 row_tile=int(row_tile), mxu_dtype=mxu_dtype)


def reference(x, w_t, b, gamma, beta):
    y = x @ w_t + b
    mean = jnp.mean(y, axis=-1, keepdims=True)
    var = jnp.mean((y - mean) ** 2, axis=-1, keepdims=True)
    y_norm = (y - mean) / jnp.sqrt(var + LN_EPS) * gamma + beta
    return x + jnp.maximum(y_norm, 0.0)


if __name__ == "__main__":
    key = jax.random.PRNGKey(0)
    in_ch = 32
    k_x, k_w, k_b, k_x2, k_x3 = jax.random.split(key, 5)

    # Deterministic parameters mimicking nn.Linear defaults
    # (uniform(-1/sqrt(in_ch), 1/sqrt(in_ch))); LayerNorm: gamma=1, beta=0.
    bound = 1.0 / jnp.sqrt(jnp.float32(in_ch))
    w = jax.random.uniform(k_w, (in_ch, in_ch), jnp.float32, -bound, bound)
    b = jax.random.uniform(k_b, (in_ch,), jnp.float32, -bound, bound)
    gamma = jnp.ones((in_ch,), jnp.float32)
    beta = jnp.zeros((in_ch,), jnp.float32)
    w_t = w.T                      # pre-transpose so the kernel does x @ W^T

    # Main check: batch=2, seq=8, features=32 (rows = batch*seq).
    batch, seq = 2, 8
    x = jax.random.normal(k_x, (batch, seq, in_ch), jnp.float32)
    x2d = x.reshape(batch * seq, in_ch)
    ref = reference(x2d, w_t, b, gamma, beta)

    # Exact-semantics path (f32 MXU operands) -> tight tolerance.
    out_f32 = jax.block_until_ready(
        linear_resblock(x2d, w_t, b, gamma, beta, mxu_dtype=jnp.float32))
    assert out_f32.shape == x2d.shape
    assert jnp.allclose(out_f32, ref, atol=1e-4, rtol=1e-4), "f32 path mismatch"

    # Default fast path (bf16 MXU operands, f32 accumulation) -> bf16 tolerance.
    out_bf = jax.block_until_ready(linear_resblock(x2d, w_t, b, gamma, beta))
    assert out_bf.shape == x2d.shape
    assert jnp.allclose(out_bf, ref, atol=5e-2, rtol=5e-2), "bf16 path mismatch"

    # Ragged-N check (exercises the minimal pack-padding + output-slice path).
    x_odd = jax.random.normal(k_x2, (21, in_ch), jnp.float32)
    ref_odd = reference(x_odd, w_t, b, gamma, beta)
    out_odd = jax.block_until_ready(
        linear_resblock(x_odd, w_t, b, gamma, beta, mxu_dtype=jnp.float32))
    assert out_odd.shape == x_odd.shape
    assert jnp.allclose(out_odd, ref_odd, atol=1e-4, rtol=1e-4), "ragged mismatch"

    # Multi-tile check: 2048 rows -> 512 packed rows -> exactly 2 row tiles
    # (even split, so both v7x TensorCores get work).
    x_big = jax.random.normal(k_x3, (2048, in_ch), jnp.float32)
    ref_big = reference(x_big, w_t, b, gamma, beta)
    out_big = jax.block_until_ready(linear_resblock(x_big, w_t, b, gamma, beta))
    assert out_big.shape == x_big.shape
    assert jnp.allclose(out_big, ref_big, atol=5e-2, rtol=5e-2), "multi-tile mismatch"

    print("KERNEL_OK")
</pallas_src>

<mosaic_0001>
module attributes {stable_mosaic.version = 11 : i64} {
  func.func @_linear_resblock_kernel(%arg0: i32, %arg1: memref<8x128xf32, #tpu.memory_space<vmem>>, %arg2: memref<128x256xf32, #tpu.memory_space<vmem>>, %arg3: memref<128x128xf32, #tpu.memory_space<vmem>>, %arg4: memref<3x128xf32, #tpu.memory_space<vmem>>, %arg5: memref<8x128xf32, #tpu.memory_space<vmem>>) attributes {dimension_semantics = [#tpu.dimension_semantics<parallel>], iteration_bounds = array<i64: 1>, scalar_prefetch = 0 : i64, scratch_operands = 0 : i64, tpu.core_type = #tpu.core_type<tc>, window_params = [{transform_indices = @transform_0, window_bounds = array<i64: 8, 128>}, {pipeline_mode = #tpu.pipeline_mode<synchronous>, transform_indices = @transform_1, window_bounds = array<i64: 128, 256>}, {pipeline_mode = #tpu.pipeline_mode<synchronous>, transform_indices = @transform_2, window_bounds = array<i64: 128, 128>}, {pipeline_mode = #tpu.pipeline_mode<synchronous>, transform_indices = @transform_3, window_bounds = array<i64: 3, 128>}, {transform_indices = @transform_4, window_bounds = array<i64: 8, 128>}]} {
    %c0 = arith.constant 0 : index
    %c0_0 = arith.constant 0 : index
    %0 = vector.load %arg1[%c0, %c0_0] : memref<8x128xf32, #tpu.memory_space<vmem>>, vector<8x128xf32>
    %c0_1 = arith.constant 0 : index
    %c0_2 = arith.constant 0 : index
    %1 = vector.load %arg2[%c0_1, %c0_2] : memref<128x256xf32, #tpu.memory_space<vmem>>, vector<128x256xf32>
    %cst = arith.constant dense<0.000000e+00> : vector<8x256xf32>
    %2 = tpu.matmul %0, %1, %cst {dimension_numbers = #tpu.dot_dimension_numbers<[1], [0], [0], [1], [0, 0, 1, 1], [], []>} : vector<8x128xf32>, vector<128x256xf32>, vector<8x256xf32> -> vector<8x256xf32>
    %3 = vector.extract_strided_slice %2 {offsets = [0, 0], sizes = [8, 128], strides = [1, 1]} : vector<8x256xf32> to vector<8x128xf32>
    %4 = vector.extract_strided_slice %2 {offsets = [0, 128], sizes = [8, 128], strides = [1, 1]} : vector<8x256xf32> to vector<8x128xf32>
    %c0_3 = arith.constant 0 : index
    %c0_4 = arith.constant 0 : index
    %5 = vector.load %arg4[%c0_3, %c0_4] : memref<3x128xf32, #tpu.memory_space<vmem>>, vector<3x128xf32>
    %6 = arith.subf %3, %4 : vector<8x128xf32>
    %7 = vector.extract_strided_slice %5 {offsets = [0, 0], sizes = [1, 128], strides = [1, 1]} : vector<3x128xf32> to vector<1x128xf32>
    %8 = vector.broadcast %7 : vector<1x128xf32> to vector<8x128xf32>
    %9 = arith.addf %6, %8 : vector<8x128xf32>
    %10 = arith.mulf %9, %9 : vector<8x128xf32>
    %c0_5 = arith.constant 0 : index
    %c0_6 = arith.constant 0 : index
    %11 = vector.load %arg3[%c0_5, %c0_6] : memref<128x128xf32, #tpu.memory_space<vmem>>, vector<128x128xf32>
    %cst_7 = arith.constant dense<0.000000e+00> : vector<8x128xf32>
    %12 = tpu.matmul %10, %11, %cst_7 {dimension_numbers = #tpu.dot_dimension_numbers<[1], [0], [0], [1], [0, 0, 1, 1], [], []>} : vector<8x128xf32>, vector<128x128xf32>, vector<8x128xf32> -> vector<8x128xf32>
    %cst_8 = arith.constant 9.99999974E-6 : f32
    %13 = vector.broadcast %cst_8 : f32 to vector<8x128xf32>
    %14 = arith.addf %12, %13 : vector<8x128xf32>
    %15 = math.rsqrt %14 : vector<8x128xf32>
    %16 = arith.mulf %9, %15 : vector<8x128xf32>
    %17 = vector.extract_strided_slice %5 {offsets = [1, 0], sizes = [1, 128], strides = [1, 1]} : vector<3x128xf32> to vector<1x128xf32>
    %18 = vector.broadcast %17 : vector<1x128xf32> to vector<8x128xf32>
    %19 = arith.mulf %16, %18 : vector<8x128xf32>
    %20 = vector.extract_strided_slice %5 {offsets = [2, 0], sizes = [1, 128], strides = [1, 1]} : vector<3x128xf32> to vector<1x128xf32>
    %21 = vector.broadcast %20 : vector<1x128xf32> to vector<8x128xf32>
    %22 = arith.addf %19, %21 : vector<8x128xf32>
    %cst_9 = arith.constant 0.000000e+00 : f32
    %23 = vector.broadcast %cst_9 : f32 to vector<8x128xf32>
    %24 = arith.maximumf %22, %23 : vector<8x128xf32>
    %25 = arith.addf %0, %24 : vector<8x128xf32>
    %c0_10 = arith.constant 0 : index
    %c0_11 = arith.constant 0 : index
    %26 = vector.load %arg5[%c0_10, %c0_11] : memref<8x128xf32, #tpu.memory_space<vmem>>, vector<8x128xf32>
    tpu.vector_store %arg5[%c0_10, %c0_11], %25 {strides = array<i32>} : memref<8x128xf32, #tpu.memory_space<vmem>>, vector<8x128xf32>,
    return
  }
  func.func @transform_0(%arg0: i32) -> (i32, i32) {
    %c0_i32 = arith.constant 0 : i32
    %c0_i32_0 = arith.constant 0 : i32
    return %arg0, %c0_i32 : i32, i32
  }
  func.func @transform_1(%arg0: i32) -> (i32, i32) {
    %c0_i32 = arith.constant 0 : i32
    %c0_i32_0 = arith.constant 0 : i32
    %c0_i32_1 = arith.constant 0 : i32
    return %c0_i32, %c0_i32_0 : i32, i32
  }
  func.func @transform_2(%arg0: i32) -> (i32, i32) {
    %c0_i32 = arith.constant 0 : i32
    %c0_i32_0 = arith.constant 0 : i32
    %c0_i32_1 = arith.constant 0 : i32
    return %c0_i32, %c0_i32_0 : i32, i32
  }
  func.func @transform_3(%arg0: i32) -> (i32, i32) {
    %c0_i32 = arith.constant 0 : i32
    %c0_i32_0 = arith.constant 0 : i32
    %c0_i32_1 = arith.constant 0 : i32
    return %c0_i32, %c0_i32_0 : i32, i32
  }
  func.func @transform_4(%arg0: i32) -> (i32, i32) {
    %c0_i32 = arith.constant 0 : i32
    %c0_i32_0 = arith.constant 0 : i32
    return %arg0, %c0_i32 : i32, i32
  }
}

</mosaic_0001>

<llo_original>
// kernel: tile.18
$region0: #{tile.18}
  #allocation0 [shape = 's32[1]{0}', space=sflag, size = 0x4, scoped, tag = 'scoped memory for tile.18']
  %s0 = inlined_call_operand.vmem [shape: f32[32], index: 0, kind: input, shape index: {}]
  %s1 = inlined_call_operand.vmem [shape: f32[4,32], index: 1, kind: output, shape index: {}]
  // Predicated region
  $region2: #{tile.18} parent=0 // pred_check
    _
  $region3: #{tile.18} parent=0 // pred_check_branch
    %3 = sbr.rel (0) target = $region5
  $region4: #{tile.18} parent=0 // pred_region
    _
  $region5: #{tile.18} parent=0 // pred_fallthru
    _
  %v4 = vld [vmem:[%s0] ss:$0 sm:$0xff]
  %5 = vst [vmem:[%s1] sm:$0xf] %v4

// kernel: tile.27
$region0: #{tile.27}
  %s0 = inlined_call_operand.vmem [shape: f32[4,32], index: 0, kind: input, shape index: {}]
  %s1 = inlined_call_operand.vmem [shape: f32[1,128], index: 1, kind: output, shape index: {}]
  $region1: #{tile.27} parent=0
    #allocation0 [shape = 'u8[4096]{0}', space=vmem, size = 0x1000, scoped, tag = 'scoped mem for output reshape']
    #allocation1 [shape = 'u8[4096]{0}', space=vmem, size = 0x1000, scoped, tag = 'scoped mem for input reshape']
    %s3 = sshll.u32 1, 4
    %s4 = ssub.s32 %s3, 1
    %v5 = vld [vmem:[%s0] sm:%s4]
    %6 = vst [vmem:[#allocation1] sm:%s4] %v5
    %v7 = vld [vmem:[#allocation1] sm:$0x1]
    %vm8 = vcmask 261120
    %9 = vst.msk [vmem:[#allocation0] sm:$0x1] %vm8, %v7
    %s10 = scalar_lea.vmem [#allocation1], 3
    %v11 = vld [vmem:[%s10] sm:$0x1]
    %12 = vrot.lane.b32.xlu0 %v11, 96
    %v13 = vpop.permute.xlu0 %12
    %vm14 = vcmask 1048320
    %15 = vst.msk [vmem:[#allocation0] sm:$0x1] %vm14, %v13
    %s16 = scalar_lea.vmem [#allocation1], 2
    %v17 = vld [vmem:[%s16] sm:$0x1]
    %18 = vrot.lane.b32.xlu0 %v17, 64
    %v19 = vpop.permute.xlu0 %18
    %vm20 = vcmask 785920
    %21 = vst.msk [vmem:[#allocation0] sm:$0x1] %vm20, %v19
    %s22 = scalar_lea.vmem [#allocation1], 1
    %v23 = vld [vmem:[%s22] sm:$0x1]
    %24 = vrot.lane.b32.xlu0 %v23, 32
    %v25 = vpop.permute.xlu0 %24
    %vm26 = vcmask 523520
    %27 = vst.msk [vmem:[#allocation0] sm:$0x1] %vm26, %v25
    %s29 = sshll.u32 1, 1
    %s30 = ssub.s32 %s29, 1
    %v32 = vld [vmem:[#allocation0] sm:%s30]
    %s33 = sshll.u32 1, 1
    %s34 = ssub.s32 %s33, 1
    %35 = vst [vmem:[%s1] sm:%s34] %v32

// kernel: _linear_resblock_impl.1
$region0: #{_linear_resblock_impl.1}
  #allocation0 [shape = 'u32[]', space=smem, size = 0x4, offset = 0x4, fixed_abs, tag = 'smem constant byte address 0x4 - core index']
  #allocation1 [shape = 'u32[144,128]{1,0:T(1,128)}', space=vmem, size = 0x12000, scoped, tag = 'internal scratch']
  %s0 = inlined_call_operand.vmem [shape: f32[8,128], index: 0, kind: input, shape index: {}]
  %s1 = inlined_call_operand.vmem [shape: f32[128,256], index: 1, kind: input, shape index: {}]
  %s2 = inlined_call_operand.vmem [shape: f32[128,128], index: 2, kind: input, shape index: {}]
  %s3 = inlined_call_operand.vmem [shape: f32[3,128], index: 3, kind: input, shape index: {}]
  %s4 = inlined_call_operand.vmem [shape: f32[8,128], index: 4, kind: output, shape index: {}]
  %s5 = sld [smem:[#allocation0]]
  $region26: #{_linear_resblock_impl.1} parent=0
    _
  %s7 = ssub.s32 1, %s5
  %s8 = scalar_select 0, %s7, %s5
  // Predicated region
  $region2: #{_linear_resblock_impl.1} parent=0 // pred_check
    _
  $region3: #{_linear_resblock_impl.1} parent=0 // pred_check_branch
    %10 = sbr.rel (0) target = $region5
  $region4: #{_linear_resblock_impl.1} parent=0 // pred_region
    _
  $region5: #{_linear_resblock_impl.1} parent=0 // pred_fallthru
    _
  // Predicated region
  $region6: #{_linear_resblock_impl.1} parent=0 // pred_check
    _
  $region7: #{_linear_resblock_impl.1} parent=0 // pred_check_branch
    %12 = sbr.rel (0) target = $region9
  $region8: #{_linear_resblock_impl.1} parent=0 // pred_region
    _
  $region9: #{_linear_resblock_impl.1} parent=0 // pred_fallthru
    _
  // Predicated region
  $region10: #{_linear_resblock_impl.1} parent=0 // pred_check
    _
  $region11: #{_linear_resblock_impl.1} parent=0 // pred_check_branch
    %14 = sbr.rel (0) target = $region13
  $region12: #{_linear_resblock_impl.1} parent=0 // pred_region
    _
  $region13: #{_linear_resblock_impl.1} parent=0 // pred_fallthru
    _
  // Predicated region
  $region14: #{_linear_resblock_impl.1} parent=0 // pred_check
    _
  $region15: #{_linear_resblock_impl.1} parent=0 // pred_check_branch
    %16 = sbr.rel (0) target = $region17
  $region16: #{_linear_resblock_impl.1} parent=0 // pred_region
    _
  $region17: #{_linear_resblock_impl.1} parent=0 // pred_fallthru
    _
  %v17 = vld [vmem:[%s0] sm:$0xff]
  %v18 = vld [vmem:[%s1] sm:$0xff]
  %v19 = vld [vmem:[%s1 + $0x8] sm:$0xff]
  %v20 = vld [vmem:[%s1 + $0x10] sm:$0xff]
  %v21 = vld [vmem:[%s1 + $0x18] sm:$0xff]
  %v22 = vld [vmem:[%s1 + $0x20] sm:$0xff]
  %v23 = vld [vmem:[%s1 + $0x28] sm:$0xff]
  %v24 = vld [vmem:[%s1 + $0x30] sm:$0xff]
  %v25 = vld [vmem:[%s1 + $0x38] sm:$0xff]
  %v26 = vld [vmem:[%s1 + $0x40] sm:$0xff]
  %v27 = vld [vmem:[%s1 + $0x48] sm:$0xff]
  %v28 = vld [vmem:[%s1 + $0x50] sm:$0xff]
  %v29 = vld [vmem:[%s1 + $0x58] sm:$0xff]
  %v30 = vld [vmem:[%s1 + $0x60] sm:$0xff]
  %v31 = vld [vmem:[%s1 + $0x68] sm:$0xff]
  %v32 = vld [vmem:[%s1 + $0x70] sm:$0xff]
  %v33 = vld [vmem:[%s1 + $0x78] sm:$0xff]
  %v34 = vld [vmem:[%s1 + $0x80] sm:$0xff]
  %v35 = vld [vmem:[%s1 + $0x88] sm:$0xff]
  %v36 = vld [vmem:[%s1 + $0x90] sm:$0xff]
  %v37 = vld [vmem:[%s1 + $0x98] sm:$0xff]
  %v38 = vld [vmem:[%s1 + $0xa0] sm:$0xff]
  %v39 = vld [vmem:[%s1 + $0xa8] sm:$0xff]
  %v40 = vld [vmem:[%s1 + $0xb0] sm:$0xff]
  %v41 = vld [vmem:[%s1 + $0xb8] sm:$0xff]
  %v42 = vld [vmem:[%s1 + $0xc0] sm:$0xff]
  %v43 = vld [vmem:[%s1 + $0xc8] sm:$0xff]
  %v44 = vld [vmem:[%s1 + $0xd0] sm:$0xff]
  %v45 = vld [vmem:[%s1 + $0xd8] sm:$0xff]
  %v46 = vld [vmem:[%s1 + $0xe0] sm:$0xff]
  %v47 = vld [vmem:[%s1 + $0xe8] sm:$0xff]
  %v48 = vld [vmem:[%s1 + $0xf0] sm:$0xff]
  %v49 = vld [vmem:[%s1 + $0xf8] sm:$0xff]
  %50 = vmatprep.subr.mxu0 %v49
  %51 = vmatpush1.msra.mxu0 %v48
  %52 = vmatprep.subr.mxu0 %v47
  %53 = vmatpush1.msra.mxu0 %v46
  %54 = vmatprep.subr.mxu0 %v45
  %55 = vmatpush1.msra.mxu0 %v44
  %56 = vmatprep.subr.mxu0 %v43
  %57 = vmatpush1.msra.mxu0 %v42
  %58 = vmatprep.subr.mxu0 %v41
  %59 = vmatpush1.msra.mxu0 %v40
  %60 = vmatprep.subr.mxu0 %v39
  %61 = vmatpush1.msra.mxu0 %v38
  %62 = vmatprep.subr.mxu0 %v37
  %63 = vmatpush1.msra.mxu0 %v36
  %64 = vmatprep.subr.mxu0 %v35
  %65 = vmatpush1.msra.mxu0 %v34
  %66 = vmatprep.subr.mxu0 %v33
  %67 = vmatpush1.msra.mxu0 %v32
  %68 = vmatprep.subr.mxu0 %v31
  %69 = vmatpush1.msra.mxu0 %v30
  %70 = vmatprep.subr.mxu0 %v29
  %71 = vmatpush1.msra.mxu0 %v28
  %72 = vmatprep.subr.mxu0 %v27
  %73 = vmatpush1.msra.mxu0 %v26
  %74 = vmatprep.subr.mxu0 %v25
  %75 = vmatpush1.msra.mxu0 %v24
  %76 = vmatprep.subr.mxu0 %v23
  %77 = vmatpush1.msra.mxu0 %v22
  %78 = vmatprep.subr.mxu0 %v21
  %79 = vmatpush1.msra.mxu0 %v20
  %80 = vmatprep.subr.mxu0 %v19
  %81 = vmatpush1.msra.mxu0 %v18
  %82 = vmatprep.subr.mxu0 0.0
  %83 = vmatpush2.msra.mxu0 0.0
  %84 = vmatprep.subr.mxu0 0.0
  %85 = vmatpush2.msra.mxu0 0.0
  %86 = vmatprep.subr.mxu0 0.0
  %87 = vmatpush2.msra.mxu0 0.0
  %88 = vmatprep.subr.mxu0 0.0
  %89 = vmatpush2.msra.mxu0 0.0
  %90 = vmatprep.subr.mxu0 0.0
  %91 = vmatpush2.msra.mxu0 0.0
  %92 = vmatprep.subr.mxu0 0.0
  %93 = vmatpush2.msra.mxu0 0.0
  %94 = vmatprep.subr.mxu0 0.0
  %95 = vmatpush2.msra.mxu0 0.0
  %96 = vmatprep.subr.mxu0 0.0
  %97 = vmatpush2.msra.mxu0 0.0
  %98 = vmatprep.subr.mxu0 0.0
  %99 = vmatpush2.msra.mxu0 0.0
  %100 = vmatprep.subr.mxu0 0.0
  %101 = vmatpush2.msra.mxu0 0.0
  %102 = vmatprep.subr.mxu0 0.0
  %103 = vmatpush2.msra.mxu0 0.0
  %104 = vmatprep.subr.mxu0 0.0
  %105 = vmatpush2.msra.mxu0 0.0
  %106 = vmatprep.subr.mxu0 0.0
  %107 = vmatpush2.msra.mxu0 0.0
  %108 = vmatprep.subr.mxu0 0.0
  %109 = vmatpush2.msra.mxu0 0.0
  %110 = vmatprep.subr.mxu0 0.0
  %111 = vmatpush2.msra.mxu0 0.0
  %112 = vmatprep.subr.mxu0 0.0
  %113 = vmatpush2.msra.mxu0 0.0
  %114 = vmatprep.mubr.f32.mxu0 0.0
  %115 = vmatmul.mubr.f32.gmra.mxu0 %v17
  %v116 = vpop.f32.mrf.mxu0
  %v117 = vadd.f32 0.0, %v116
  %v118 = vpop.f32.mrf.mxu0
  %v119 = vadd.f32 0.0, %v118
  %120 = vdwg.mxu0
  %v121 = vld [vmem:[%s3] sm:$0x7]
  %v122 = vsub.f32 %v117, %v119
  %v123 = vlaneseq
  %v124 = vshrl.u32 %v123, 7
  %v125 = vsub.s32 0, %v124
  %v126 = vrot.slane %v121, %v125
  %v127 = vadd.f32 %v122, %v126
  %v128 = vmul.f32 %v127, %v127
  %v129 = vld [vmem:[%s2] sm:$0xff]
  %v130 = vld [vmem:[%s2 + $0x8] sm:$0xff]
  %v131 = vld [vmem:[%s2 + $0x10] sm:$0xff]
  %v132 = vld [vmem:[%s2 + $0x18] sm:$0xff]
  %v133 = vld [vmem:[%s2 + $0x20] sm:$0xff]
  %v134 = vld [vmem:[%s2 + $0x28] sm:$0xff]
  %v135 = vld [vmem:[%s2 + $0x30] sm:$0xff]
  %v136 = vld [vmem:[%s2 + $0x38] sm:$0xff]
  %v137 = vld [vmem:[%s2 + $0x40] sm:$0xff]
  %v138 = vld [vmem:[%s2 + $0x48] sm:$0xff]
  %v139 = vld [vmem:[%s2 + $0x50] sm:$0xff]
  %v140 = vld [vmem:[%s2 + $0x58] sm:$0xff]
  %v141 = vld [vmem:[%s2 + $0x60] sm:$0xff]
  %v142 = vld [vmem:[%s2 + $0x68] sm:$0xff]
  %v143 = vld [vmem:[%s2 + $0x70] sm:$0xff]
  %v144 = vld [vmem:[%s2 + $0x78] sm:$0xff]
  %145 = vmatprep.subr.mxu0 0.0
  %146 = vmatpush1.msra.mxu0 %v144
  %147 = vmatprep.subr.mxu0 0.0
  %148 = vmatpush1.msra.mxu0 %v143
  %149 = vmatprep.subr.mxu0 0.0
  %150 = vmatpush1.msra.mxu0 %v142
  %151 = vmatprep.subr.mxu0 0.0
  %152 = vmatpush1.msra.mxu0 %v141
  %153 = vmatprep.subr.mxu0 0.0
  %154 = vmatpush1.msra.mxu0 %v140
  %155 = vmatprep.subr.mxu0 0.0
  %156 = vmatpush1.msra.mxu0 %v139
  %157 = vmatprep.subr.mxu0 0.0
  %158 = vmatpush1.msra.mxu0 %v138
  %159 = vmatprep.subr.mxu0 0.0
  %160 = vmatpush1.msra.mxu0 %v137
  %161 = vmatprep.subr.mxu0 0.0
  %162 = vmatpush1.msra.mxu0 %v136
  %163 = vmatprep.subr.mxu0 0.0
  %164 = vmatpush1.msra.mxu0 %v135
  %165 = vmatprep.subr.mxu0 0.0
  %166 = vmatpush1.msra.mxu0 %v134
  %167 = vmatprep.subr.mxu0 0.0
  %168 = vmatpush1.msra.mxu0 %v133
  %169 = vmatprep.subr.mxu0 0.0
  %170 = vmatpush1.msra.mxu0 %v132
  %171 = vmatprep.subr.mxu0 0.0
  %172 = vmatpush1.msra.mxu0 %v131
  %173 = vmatprep.subr.mxu0 0.0
  %174 = vmatpush1.msra.mxu0 %v130
  %175 = vmatprep.subr.mxu0 0.0
  %176 = vmatpush1.msra.mxu0 %v129
  %177 = vmatprep.subr.mxu0 0.0
  %178 = vmatpush2.msra.mxu0 0.0
  %179 = vmatprep.subr.mxu0 0.0
  %180 = vmatpush2.msra.mxu0 0.0
  %181 = vmatprep.subr.mxu0 0.0
  %182 = vmatpush2.msra.mxu0 0.0
  %183 = vmatprep.subr.mxu0 0.0
  %184 = vmatpush2.msra.mxu0 0.0
  %185 = vmatprep.subr.mxu0 0.0
  %186 = vmatpush2.msra.mxu0 0.0
  %187 = vmatprep.subr.mxu0 0.0
  %188 = vmatpush2.msra.mxu0 0.0
  %189 = vmatprep.subr.mxu0 0.0
  %190 = vmatpush2.msra.mxu0 0.0
  %191 = vmatprep.subr.mxu0 0.0
  %192 = vmatpush2.msra.mxu0 0.0
  %193 = vmatprep.subr.mxu0 0.0
  %194 = vmatpush2.msra.mxu0 0.0
  %195 = vmatprep.subr.mxu0 0.0
  %196 = vmatpush2.msra.mxu0 0.0
  %197 = vmatprep.subr.mxu0 0.0
  %198 = vmatpush2.msra.mxu0 0.0
  %199 = vmatprep.subr.mxu0 0.0
  %200 = vmatpush2.msra.mxu0 0.0
  %201 = vmatprep.subr.mxu0 0.0
  %202 = vmatpush2.msra.mxu0 0.0
  %203 = vmatprep.subr.mxu0 0.0
  %204 = vmatpush2.msra.mxu0 0.0
  %205 = vmatprep.subr.mxu0 0.0
  %206 = vmatpush2.msra.mxu0 0.0
  %207 = vmatprep.subr.mxu0 0.0
  %208 = vmatpush2.msra.mxu0 0.0
  %209 = vmatprep.mubr.f32.mxu0 0.0
  %210 = vmatmul.mubr.f32.gmra.mxu0 %v128
  %v211 = vpop.f32.mrf.mxu0
  %v212 = vadd.f32 1e-05, %v211
  %v213 = vpop.f32.mrf.mxu0
  %214 = vdwg.mxu0
  %v215 = vrsqrt.pop %v212
  %v216 = vmul.f32 %v127, %v215
  %v217 = vlaneseq
  %v218 = vshrl.u32 %v217, 7
  %v219 = vsub.s32 1, %v218
  %v220 = vrot.slane %v121, %v219
  %v221 = vmul.f32 %v216, %v220
  %v222 = vlaneseq
  %v223 = vshrl.u32 %v222, 7
  %v224 = vsub.s32 2, %v223
  %v225 = vrot.slane %v121, %v224
  %v226 = vadd.f32 %v221, %v225
  %v227 = vmax.f32 %v226, 0.0
  %v228 = vadd.f32 %v17, %v227
  %229 = vst [vmem:[%s4] sm:$0xff] %v228
  // Predicated region
  $region18: #{_linear_resblock_impl.1} parent=0 // pred_check
    _
  $region19: #{_linear_resblock_impl.1} parent=0 // pred_check_branch
    %231 = sbr.rel (0) target = $region21
  $region20: #{_linear_resblock_impl.1} parent=0 // pred_region
    _
  $region21: #{_linear_resblock_impl.1} parent=0 // pred_fallthru
    _
  // Predicated region
  $region22: #{_linear_resblock_impl.1} parent=0 // pred_check
    _
  $region23: #{_linear_resblock_impl.1} parent=0 // pred_check_branch
    %233 = sbr.rel (0) target = $region25
  $region24: #{_linear_resblock_impl.1} parent=0 // pred_region
    _
  $region25: #{_linear_resblock_impl.1} parent=0 // pred_fallthru
    _

</llo_original>
